<compile_context>
chip_gen: v7x
topology: tpu7x:2x2x1
jax: 0.10.0
libtpu: 0.0.40
codegen_flags: <defaults>
</compile_context>

<pallas_src>
import numpy as np
import jax
import jax.numpy as jnp
from jax.experimental import pallas as pl
from jax.experimental.pallas import tpu as pltpu

_LANES = 128          # vreg lane width
_SUBLANES = 8         # f32 sublanes per vreg
_MIN_SPLIT_ROWS = 256 # only use >1 grid step when each step gets >= this many rows


def _round_up(a, b):
    return -(-a // b) * b


# ----------------------------------------------------------------------------
# Parameter setup (numpy glue — mirrors the PyTorch __init__ helpers)
# ----------------------------------------------------------------------------
def get_cheb_nodes(n):
    """Chebyshev points of the second kind: cos(pi * linspace(0, 1, n))."""
    i = np.linspace(0.0, 1.0, n)
    return np.cos(np.pi * i)


def compute_barycentric_weights(nodes):
    """Numpy port of the torch compute_barycentric_weights (no poles)."""
    n = len(nodes)
    log_weights = np.zeros_like(nodes)
    signs = np.ones_like(nodes)
    for j in range(n):
        diffs = nodes[j] - nodes
        diffs = diffs[np.arange(n) != j]
        log_weights[j] = -np.sum(np.log(np.abs(diffs)))
        signs[j] = (-1.0) ** np.sum(diffs < 0)
    log_weights = log_weights - log_weights.max()
    weights = signs * np.exp(log_weights)
    weights = weights / np.abs(weights[0])
    return weights


# ----------------------------------------------------------------------------
# Pallas kernel: barycentric interpolation hot path
# ----------------------------------------------------------------------------
def _make_bary_kernel(chunk_rows):
    """Kernel factory: one (br, 128) tile, strip-mined over `chunk_rows` rows."""

    def _bary_kernel(x_ref, nodes_ref, w_ref, vw_ref, v_ref, o_ref):
        n_nodes = nodes_ref.shape[0]          # static (16)
        br = x_ref.shape[0]                   # static tile rows
        num_chunks = br // chunk_rows         # static

        @pl.loop(0, num_chunks)
        def _(c):
            start = pl.multiple_of(c * chunk_rows, chunk_rows)
            x = x_ref[pl.ds(start, chunk_rows), :]        # register-resident chunk
            num = jnp.zeros_like(x)
            den = jnp.zeros_like(x)
            hit_val = jnp.full_like(x, jnp.nan)           # NaN sentinel = "no exact hit"

            # Unrolled loop over the (static, small) node count: pure VPU work
            # with scalar splats from SMEM; no cross-sublane reductions.
            for j in range(n_nodes):
                d = x - nodes_ref[j]
                r = 1.0 / d                               # full-precision reciprocal
                num = num + vw_ref[j] * r                 # vw = values * weights (hoisted)
                den = den + w_ref[j] * r
                small = jnp.abs(d) < 1e-14                # exact-hit mask (matches torch)
                hit_val = jnp.where(small, v_ref[j], hit_val)

            res = num / den
            # Lanes that hit a node exactly return that node's value
            # (identical to the torch small_diff semantics for distinct nodes).
            o_ref[pl.ds(start, chunk_rows), :] = jnp.where(
                jnp.isnan(hit_val), res, hit_val)

    return _bary_kernel


def rational_interp_forward(x_eval, nodes, weights, values, *, max_block_rows=1024):
    """Evaluate the rational interpolant at x_eval (1-D array, any length)."""
    orig_dtype = x_eval.dtype
    x_eval = x_eval.astype(jnp.float32)       # kernel layout assumes f32 (8,128) tiling
    nodes = nodes.astype(jnp.float32)
    weights = weights.astype(jnp.float32)
    values = values.astype(jnp.float32)

    M = x_eval.shape[0]

    # Dense (rows, 128) re-layout of the eval points; rows rounded to a
    # multiple of 8 so every tile is made of full 8x128 f32 vregs.
    rows = _round_up(-(-M // _LANES), _SUBLANES)

    # Work-aware grid split: single step for small inputs (the grid is a serial
    # loop on v5e/v6e), >=2 balanced steps only when each step has substantial
    # work (v7x megacore).
    if rows > 2 * _MIN_SPLIT_ROWS:
        br = min(max_block_rows, _round_up(-(-rows // 2), _SUBLANES))
    else:
        br = rows
    rows_p = _round_up(rows, br)
    Mp = rows_p * _LANES

    # In-kernel strip-mining chunk (keeps per-chunk state register-resident).
    if br % 32 == 0:
        chunk_rows = 32
    elif br % 16 == 0:
        chunk_rows = 16
    else:
        chunk_rows = _SUBLANES

    if Mp == M:
        x2 = x_eval.reshape(rows_p, _LANES)               # fast path: no pad pass
    else:
        # Pad with 2.0 (outside [-1, 1], never an exact node hit); padded
        # lanes are discarded after the call.
        x2 = jnp.pad(x_eval, (0, Mp - M), constant_values=2.0).reshape(rows_p, _LANES)

    vw = values * weights                                  # hoisted out of the kernel

    out2 = pl.pallas_call(
        _make_bary_kernel(chunk_rows),
        out_shape=jax.ShapeDtypeStruct((rows_p, _LANES), jnp.float32),
        grid=(rows_p // br,),
        in_specs=[
            pl.BlockSpec((br, _LANES), lambda i: (i, 0)),        # eval points
            pl.BlockSpec(memory_space=pltpu.MemorySpace.SMEM),   # nodes
            pl.BlockSpec(memory_space=pltpu.MemorySpace.SMEM),   # weights
            pl.BlockSpec(memory_space=pltpu.MemorySpace.SMEM),   # values*weights
            pl.BlockSpec(memory_space=pltpu.MemorySpace.SMEM),   # values
        ],
        out_specs=pl.BlockSpec((br, _LANES), lambda i: (i, 0)),
        compiler_params=pltpu.CompilerParams(
            dimension_semantics=("parallel",)),
    )(x2, nodes, weights, vw, values)

    out = out2.reshape(-1)
    if Mp != M:
        out = out[:M]
    return out.astype(orig_dtype)


# ----------------------------------------------------------------------------
# float64 numpy reference (direct transcription of torch _interpolate)
# ----------------------------------------------------------------------------
def _interpolate_ref_np(x_eval, nodes, weights, values):
    x_eval = np.asarray(x_eval, dtype=np.float64)
    nodes = np.asarray(nodes, dtype=np.float64)
    weights = np.asarray(weights, dtype=np.float64)
    values = np.asarray(values, dtype=np.float64)
    d_x = x_eval[None, :] - nodes[:, None]
    small_diff = np.abs(d_x) < 1e-14
    small_diff_max = np.any(small_diff, axis=0)
    with np.errstate(divide="ignore"):
        d_x = np.where(small_diff_max[None, :], np.zeros_like(d_x), 1.0 / d_x)
    d_x[small_diff] = 1.0
    f_num = np.einsum('n,nm,n->m', values, d_x, weights)
    f_den = np.einsum('nm,n->m', d_x, weights)
    return f_num / f_den


# TODO(synk): derivative_matrix / derivative() (spectral differentiation) are not
# part of forward() and are left to plain JAX if ever needed.

if __name__ == "__main__":
    num_points = 16   # Chebyshev nodes (module param count)
    n_eval = 1000     # matches the module's default x_eval = linspace(-1, 1, 1000)

    # Deterministic parameter initialization (per __init__: nodes + bary weights;
    # self.values inits to zeros — use a deterministic random draw instead so
    # the output is non-trivial).
    nodes_np = get_cheb_nodes(num_points).astype(np.float32)
    weights_np = compute_barycentric_weights(nodes_np.astype(np.float64)).astype(np.float32)

    key = jax.random.PRNGKey(0)
    values = jax.random.normal(key, (num_points,), dtype=jnp.float32)

    nodes = jnp.asarray(nodes_np)
    weights = jnp.asarray(weights_np)

    # Eval points in [-1, 1]; endpoints coincide exactly with nodes, which
    # exercises the exact-hit branch.
    x_eval = jnp.linspace(-1.0, 1.0, n_eval, dtype=jnp.float32)

    out = rational_interp_forward(x_eval, nodes, weights, values)
    out = jax.block_until_ready(out)

    ref = _interpolate_ref_np(np.asarray(x_eval), nodes_np, weights_np, np.asarray(values))
    np.testing.assert_allclose(np.asarray(out), ref.astype(np.float32), rtol=2e-5, atol=2e-5)

    assert out.shape == (n_eval,) and out.dtype == jnp.float32
    print("KERNEL_OK")
</pallas_src>

<mosaic_0001>
module attributes {stable_mosaic.version = 11 : i64} {
  func.func @_bary_kernel(%arg0: i32, %arg1: memref<8x128xf32, #tpu.memory_space<vmem>>, %arg2: memref<16xf32, #tpu.memory_space<smem>>, %arg3: memref<16xf32, #tpu.memory_space<smem>>, %arg4: memref<16xf32, #tpu.memory_space<smem>>, %arg5: memref<16xf32, #tpu.memory_space<smem>>, %arg6: memref<8x128xf32, #tpu.memory_space<vmem>>) attributes {dimension_semantics = [#tpu.dimension_semantics<parallel>], iteration_bounds = array<i64: 1>, scalar_prefetch = 0 : i64, scratch_operands = 0 : i64, tpu.core_type = #tpu.core_type<tc>, window_params = [{transform_indices = @transform_0, window_bounds = array<i64: 8, 128>}, {transform_indices = @transform_1, window_bounds = array<i64: 16>}, {transform_indices = @transform_2, window_bounds = array<i64: 16>}, {transform_indices = @transform_3, window_bounds = array<i64: 16>}, {transform_indices = @transform_4, window_bounds = array<i64: 16>}, {transform_indices = @transform_5, window_bounds = array<i64: 8, 128>}]} {
    %c0_i32 = arith.constant 0 : i32
    %c1_i32 = arith.constant 1 : i32
    %0 = arith.muli %c0_i32, %c1_i32 : i32
    %c0_i32_0 = arith.constant 0 : i32
    %1 = arith.addi %c0_i32_0, %0 : i32
    %c8_i32 = arith.constant 8 : i32
    %2 = arith.muli %1, %c8_i32 : i32
    %3 = tpu.assume_multiple %2, 8 : i32
    %4 = arith.index_cast %3 : i32 to index
    %c0 = arith.constant 0 : index
    %5 = vector.load %arg1[%4, %c0] : memref<8x128xf32, #tpu.memory_space<vmem>>, vector<8x128xf32>
    %cst = arith.constant 0.000000e+00 : f32
    %6 = vector.broadcast %cst : f32 to vector<8x128xf32>
    %cst_1 = arith.constant 0.000000e+00 : f32
    %7 = vector.broadcast %cst_1 : f32 to vector<8x128xf32>
    %cst_2 = arith.constant 0x7FC00000 : f32
    %8 = vector.broadcast %cst_2 : f32 to vector<8x128xf32>
    %c0_3 = arith.constant 0 : index
    %9 = memref.load %arg2[%c0_3] : memref<16xf32, #tpu.memory_space<smem>>
    %10 = vector.broadcast %9 : f32 to vector<8x128xf32>
    %11 = arith.subf %5, %10 : vector<8x128xf32>
    %cst_4 = arith.constant 1.000000e+00 : f32
    %12 = vector.broadcast %cst_4 : f32 to vector<8x128xf32>
    %13 = arith.divf %12, %11 : vector<8x128xf32>
    %c0_5 = arith.constant 0 : index
    %14 = memref.load %arg4[%c0_5] : memref<16xf32, #tpu.memory_space<smem>>
    %15 = vector.broadcast %14 : f32 to vector<8x128xf32>
    %16 = arith.mulf %15, %13 : vector<8x128xf32>
    %17 = arith.addf %6, %16 : vector<8x128xf32>
    %c0_6 = arith.constant 0 : index
    %18 = memref.load %arg3[%c0_6] : memref<16xf32, #tpu.memory_space<smem>>
    %19 = vector.broadcast %18 : f32 to vector<8x128xf32>
    %20 = arith.mulf %19, %13 : vector<8x128xf32>
    %21 = arith.addf %7, %20 : vector<8x128xf32>
    %22 = math.absf %11 : vector<8x128xf32>
    %cst_7 = arith.constant 9.99999982E-15 : f32
    %23 = vector.broadcast %cst_7 : f32 to vector<8x128xf32>
    %24 = arith.cmpf olt, %22, %23 : vector<8x128xf32>
    %c0_8 = arith.constant 0 : index
    %25 = memref.load %arg5[%c0_8] : memref<16xf32, #tpu.memory_space<smem>>
    %26 = vector.broadcast %25 : f32 to vector<8x128xf32>
    %27 = arith.select %24, %26, %8 : vector<8x128xi1>, vector<8x128xf32>
    %c1 = arith.constant 1 : index
    %28 = memref.load %arg2[%c1] : memref<16xf32, #tpu.memory_space<smem>>
    %29 = vector.broadcast %28 : f32 to vector<8x128xf32>
    %30 = arith.subf %5, %29 : vector<8x128xf32>
    %cst_9 = arith.constant 1.000000e+00 : f32
    %31 = vector.broadcast %cst_9 : f32 to vector<8x128xf32>
    %32 = arith.divf %31, %30 : vector<8x128xf32>
    %c1_10 = arith.constant 1 : index
    %33 = memref.load %arg4[%c1_10] : memref<16xf32, #tpu.memory_space<smem>>
    %34 = vector.broadcast %33 : f32 to vector<8x128xf32>
    %35 = arith.mulf %34, %32 : vector<8x128xf32>
    %36 = arith.addf %17, %35 : vector<8x128xf32>
    %c1_11 = arith.constant 1 : index
    %37 = memref.load %arg3[%c1_11] : memref<16xf32, #tpu.memory_space<smem>>
    %38 = vector.broadcast %37 : f32 to vector<8x128xf32>
    %39 = arith.mulf %38, %32 : vector<8x128xf32>
    %40 = arith.addf %21, %39 : vector<8x128xf32>
    %41 = math.absf %30 : vector<8x128xf32>
    %cst_12 = arith.constant 9.99999982E-15 : f32
    %42 = vector.broadcast %cst_12 : f32 to vector<8x128xf32>
    %43 = arith.cmpf olt, %41, %42 : vector<8x128xf32>
    %c1_13 = arith.constant 1 : index
    %44 = memref.load %arg5[%c1_13] : memref<16xf32, #tpu.memory_space<smem>>
    %45 = vector.broadcast %44 : f32 to vector<8x128xf32>
    %46 = arith.select %43, %45, %27 : vector<8x128xi1>, vector<8x128xf32>
    %c2 = arith.constant 2 : index
    %47 = memref.load %arg2[%c2] : memref<16xf32, #tpu.memory_space<smem>>
    %48 = vector.broadcast %47 : f32 to vector<8x128xf32>
    %49 = arith.subf %5, %48 : vector<8x128xf32>
    %cst_14 = arith.constant 1.000000e+00 : f32
    %50 = vector.broadcast %cst_14 : f32 to vector<8x128xf32>
    %51 = arith.divf %50, %49 : vector<8x128xf32>
    %c2_15 = arith.constant 2 : index
    %52 = memref.load %arg4[%c2_15] : memref<16xf32, #tpu.memory_space<smem>>
    %53 = vector.broadcast %52 : f32 to vector<8x128xf32>
    %54 = arith.mulf %53, %51 : vector<8x128xf32>
    %55 = arith.addf %36, %54 : vector<8x128xf32>
    %c2_16 = arith.constant 2 : index
    %56 = memref.load %arg3[%c2_16] : memref<16xf32, #tpu.memory_space<smem>>
    %57 = vector.broadcast %56 : f32 to vector<8x128xf32>
    %58 = arith.mulf %57, %51 : vector<8x128xf32>
    %59 = arith.addf %40, %58 : vector<8x128xf32>
    %60 = math.absf %49 : vector<8x128xf32>
    %cst_17 = arith.constant 9.99999982E-15 : f32
    %61 = vector.broadcast %cst_17 : f32 to vector<8x128xf32>
    %62 = arith.cmpf olt, %60, %61 : vector<8x128xf32>
    %c2_18 = arith.constant 2 : index
    %63 = memref.load %arg5[%c2_18] : memref<16xf32, #tpu.memory_space<smem>>
    %64 = vector.broadcast %63 : f32 to vector<8x128xf32>
    %65 = arith.select %62, %64, %46 : vector<8x128xi1>, vector<8x128xf32>
    %c3 = arith.constant 3 : index
    %66 = memref.load %arg2[%c3] : memref<16xf32, #tpu.memory_space<smem>>
    %67 = vector.broadcast %66 : f32 to vector<8x128xf32>
    %68 = arith.subf %5, %67 : vector<8x128xf32>
    %cst_19 = arith.constant 1.000000e+00 : f32
    %69 = vector.broadcast %cst_19 : f32 to vector<8x128xf32>
    %70 = arith.divf %69, %68 : vector<8x128xf32>
    %c3_20 = arith.constant 3 : index
    %71 = memref.load %arg4[%c3_20] : memref<16xf32, #tpu.memory_space<smem>>
    %72 = vector.broadcast %71 : f32 to vector<8x128xf32>
    %73 = arith.mulf %72, %70 : vector<8x128xf32>
    %74 = arith.addf %55, %73 : vector<8x128xf32>
    %c3_21 = arith.constant 3 : index
    %75 = memref.load %arg3[%c3_21] : memref<16xf32, #tpu.memory_space<smem>>
    %76 = vector.broadcast %75 : f32 to vector<8x128xf32>
    %77 = arith.mulf %76, %70 : vector<8x128xf32>
    %78 = arith.addf %59, %77 : vector<8x128xf32>
    %79 = math.absf %68 : vector<8x128xf32>
    %cst_22 = arith.constant 9.99999982E-15 : f32
    %80 = vector.broadcast %cst_22 : f32 to vector<8x128xf32>
    %81 = arith.cmpf olt, %79, %80 : vector<8x128xf32>
    %c3_23 = arith.constant 3 : index
    %82 = memref.load %arg5[%c3_23] : memref<16xf32, #tpu.memory_space<smem>>
    %83 = vector.broadcast %82 : f32 to vector<8x128xf32>
    %84 = arith.select %81, %83, %65 : vector<8x128xi1>, vector<8x128xf32>
    %c4 = arith.constant 4 : index
    %85 = memref.load %arg2[%c4] : memref<16xf32, #tpu.memory_space<smem>>
    %86 = vector.broadcast %85 : f32 to vector<8x128xf32>
    %87 = arith.subf %5, %86 : vector<8x128xf32>
    %cst_24 = arith.constant 1.000000e+00 : f32
    %88 = vector.broadcast %cst_24 : f32 to vector<8x128xf32>
    %89 = arith.divf %88, %87 : vector<8x128xf32>
    %c4_25 = arith.constant 4 : index
    %90 = memref.load %arg4[%c4_25] : memref<16xf32, #tpu.memory_space<smem>>
    %91 = vector.broadcast %90 : f32 to vector<8x128xf32>
    %92 = arith.mulf %91, %89 : vector<8x128xf32>
    %93 = arith.addf %74, %92 : vector<8x128xf32>
    %c4_26 = arith.constant 4 : index
    %94 = memref.load %arg3[%c4_26] : memref<16xf32, #tpu.memory_space<smem>>
    %95 = vector.broadcast %94 : f32 to vector<8x128xf32>
    %96 = arith.mulf %95, %89 : vector<8x128xf32>
    %97 = arith.addf %78, %96 : vector<8x128xf32>
    %98 = math.absf %87 : vector<8x128xf32>
    %cst_27 = arith.constant 9.99999982E-15 : f32
    %99 = vector.broadcast %cst_27 : f32 to vector<8x128xf32>
    %100 = arith.cmpf olt, %98, %99 : vector<8x128xf32>
    %c4_28 = arith.constant 4 : index
    %101 = memref.load %arg5[%c4_28] : memref<16xf32, #tpu.memory_space<smem>>
    %102 = vector.broadcast %101 : f32 to vector<8x128xf32>
    %103 = arith.select %100, %102, %84 : vector<8x128xi1>, vector<8x128xf32>
    %c5 = arith.constant 5 : index
    %104 = memref.load %arg2[%c5] : memref<16xf32, #tpu.memory_space<smem>>
    %105 = vector.broadcast %104 : f32 to vector<8x128xf32>
    %106 = arith.subf %5, %105 : vector<8x128xf32>
    %cst_29 = arith.constant 1.000000e+00 : f32
    %107 = vector.broadcast %cst_29 : f32 to vector<8x128xf32>
    %108 = arith.divf %107, %106 : vector<8x128xf32>
    %c5_30 = arith.constant 5 : index
    %109 = memref.load %arg4[%c5_30] : memref<16xf32, #tpu.memory_space<smem>>
    %110 = vector.broadcast %109 : f32 to vector<8x128xf32>
    %111 = arith.mulf %110, %108 : vector<8x128xf32>
    %112 = arith.addf %93, %111 : vector<8x128xf32>
    %c5_31 = arith.constant 5 : index
    %113 = memref.load %arg3[%c5_31] : memref<16xf32, #tpu.memory_space<smem>>
    %114 = vector.broadcast %113 : f32 to vector<8x128xf32>
    %115 = arith.mulf %114, %108 : vector<8x128xf32>
    %116 = arith.addf %97, %115 : vector<8x128xf32>
    %117 = math.absf %106 : vector<8x128xf32>
    %cst_32 = arith.constant 9.99999982E-15 : f32
    %118 = vector.broadcast %cst_32 : f32 to vector<8x128xf32>
    %119 = arith.cmpf olt, %117, %118 : vector<8x128xf32>
    %c5_33 = arith.constant 5 : index
    %120 = memref.load %arg5[%c5_33] : memref<16xf32, #tpu.memory_space<smem>>
    %121 = vector.broadcast %120 : f32 to vector<8x128xf32>
    %122 = arith.select %119, %121, %103 : vector<8x128xi1>, vector<8x128xf32>
    %c6 = arith.constant 6 : index
    %123 = memref.load %arg2[%c6] : memref<16xf32, #tpu.memory_space<smem>>
    %124 = vector.broadcast %123 : f32 to vector<8x128xf32>
    %125 = arith.subf %5, %124 : vector<8x128xf32>
    %cst_34 = arith.constant 1.000000e+00 : f32
    %126 = vector.broadcast %cst_34 : f32 to vector<8x128xf32>
    %127 = arith.divf %126, %125 : vector<8x128xf32>
    %c6_35 = arith.constant 6 : index
    %128 = memref.load %arg4[%c6_35] : memref<16xf32, #tpu.memory_space<smem>>
    %129 = vector.broadcast %128 : f32 to vector<8x128xf32>
    %130 = arith.mulf %129, %127 : vector<8x128xf32>
    %131 = arith.addf %112, %130 : vector<8x128xf32>
    %c6_36 = arith.constant 6 : index
    %132 = memref.load %arg3[%c6_36] : memref<16xf32, #tpu.memory_space<smem>>
    %133 = vector.broadcast %132 : f32 to vector<8x128xf32>
    %134 = arith.mulf %133, %127 : vector<8x128xf32>
    %135 = arith.addf %116, %134 : vector<8x128xf32>
    %136 = math.absf %125 : vector<8x128xf32>
    %cst_37 = arith.constant 9.99999982E-15 : f32
    %137 = vector.broadcast %cst_37 : f32 to vector<8x128xf32>
    %138 = arith.cmpf olt, %136, %137 : vector<8x128xf32>
    %c6_38 = arith.constant 6 : index
    %139 = memref.load %arg5[%c6_38] : memref<16xf32, #tpu.memory_space<smem>>
    %140 = vector.broadcast %139 : f32 to vector<8x128xf32>
    %141 = arith.select %138, %140, %122 : vector<8x128xi1>, vector<8x128xf32>
    %c7 = arith.constant 7 : index
    %142 = memref.load %arg2[%c7] : memref<16xf32, #tpu.memory_space<smem>>
    %143 = vector.broadcast %142 : f32 to vector<8x128xf32>
    %144 = arith.subf %5, %143 : vector<8x128xf32>
    %cst_39 = arith.constant 1.000000e+00 : f32
    %145 = vector.broadcast %cst_39 : f32 to vector<8x128xf32>
    %146 = arith.divf %145, %144 : vector<8x128xf32>
    %c7_40 = arith.constant 7 : index
    %147 = memref.load %arg4[%c7_40] : memref<16xf32, #tpu.memory_space<smem>>
    %148 = vector.broadcast %147 : f32 to vector<8x128xf32>
    %149 = arith.mulf %148, %146 : vector<8x128xf32>
    %150 = arith.addf %131, %149 : vector<8x128xf32>
    %c7_41 = arith.constant 7 : index
    %151 = memref.load %arg3[%c7_41] : memref<16xf32, #tpu.memory_space<smem>>
    %152 = vector.broadcast %151 : f32 to vector<8x128xf32>
    %153 = arith.mulf %152, %146 : vector<8x128xf32>
    %154 = arith.addf %135, %153 : vector<8x128xf32>
    %155 = math.absf %144 : vector<8x128xf32>
    %cst_42 = arith.constant 9.99999982E-15 : f32
    %156 = vector.broadcast %cst_42 : f32 to vector<8x128xf32>
    %157 = arith.cmpf olt, %155, %156 : vector<8x128xf32>
    %c7_43 = arith.constant 7 : index
    %158 = memref.load %arg5[%c7_43] : memref<16xf32, #tpu.memory_space<smem>>
    %159 = vector.broadcast %158 : f32 to vector<8x128xf32>
    %160 = arith.select %157, %159, %141 : vector<8x128xi1>, vector<8x128xf32>
    %c8 = arith.constant 8 : index
    %161 = memref.load %arg2[%c8] : memref<16xf32, #tpu.memory_space<smem>>
    %162 = vector.broadcast %161 : f32 to vector<8x128xf32>
    %163 = arith.subf %5, %162 : vector<8x128xf32>
    %cst_44 = arith.constant 1.000000e+00 : f32
    %164 = vector.broadcast %cst_44 : f32 to vector<8x128xf32>
    %165 = arith.divf %164, %163 : vector<8x128xf32>
    %c8_45 = arith.constant 8 : index
    %166 = memref.load %arg4[%c8_45] : memref<16xf32, #tpu.memory_space<smem>>
    %167 = vector.broadcast %166 : f32 to vector<8x128xf32>
    %168 = arith.mulf %167, %165 : vector<8x128xf32>
    %169 = arith.addf %150, %168 : vector<8x128xf32>
    %c8_46 = arith.constant 8 : index
    %170 = memref.load %arg3[%c8_46] : memref<16xf32, #tpu.memory_space<smem>>
    %171 = vector.broadcast %170 : f32 to vector<8x128xf32>
    %172 = arith.mulf %171, %165 : vector<8x128xf32>
    %173 = arith.addf %154, %172 : vector<8x128xf32>
    %174 = math.absf %163 : vector<8x128xf32>
    %cst_47 = arith.constant 9.99999982E-15 : f32
    %175 = vector.broadcast %cst_47 : f32 to vector<8x128xf32>
    %176 = arith.cmpf olt, %174, %175 : vector<8x128xf32>
    %c8_48 = arith.constant 8 : index
    %177 = memref.load %arg5[%c8_48] : memref<16xf32, #tpu.memory_space<smem>>
    %178 = vector.broadcast %177 : f32 to vector<8x128xf32>
    %179 = arith.select %176, %178, %160 : vector<8x128xi1>, vector<8x128xf32>
    %c9 = arith.constant 9 : index
    %180 = memref.load %arg2[%c9] : memref<16xf32, #tpu.memory_space<smem>>
    %181 = vector.broadcast %180 : f32 to vector<8x128xf32>
    %182 = arith.subf %5, %181 : vector<8x128xf32>
    %cst_49 = arith.constant 1.000000e+00 : f32
    %183 = vector.broadcast %cst_49 : f32 to vector<8x128xf32>
    %184 = arith.divf %183, %182 : vector<8x128xf32>
    %c9_50 = arith.constant 9 : index
    %185 = memref.load %arg4[%c9_50] : memref<16xf32, #tpu.memory_space<smem>>
    %186 = vector.broadcast %185 : f32 to vector<8x128xf32>
    %187 = arith.mulf %186, %184 : vector<8x128xf32>
    %188 = arith.addf %169, %187 : vector<8x128xf32>
    %c9_51 = arith.constant 9 : index
    %189 = memref.load %arg3[%c9_51] : memref<16xf32, #tpu.memory_space<smem>>
    %190 = vector.broadcast %189 : f32 to vector<8x128xf32>
    %191 = arith.mulf %190, %184 : vector<8x128xf32>
    %192 = arith.addf %173, %191 : vector<8x128xf32>
    %193 = math.absf %182 : vector<8x128xf32>
    %cst_52 = arith.constant 9.99999982E-15 : f32
    %194 = vector.broadcast %cst_52 : f32 to vector<8x128xf32>
    %195 = arith.cmpf olt, %193, %194 : vector<8x128xf32>
    %c9_53 = arith.constant 9 : index
    %196 = memref.load %arg5[%c9_53] : memref<16xf32, #tpu.memory_space<smem>>
    %197 = vector.broadcast %196 : f32 to vector<8x128xf32>
    %198 = arith.select %195, %197, %179 : vector<8x128xi1>, vector<8x128xf32>
    %c10 = arith.constant 10 : index
    %199 = memref.load %arg2[%c10] : memref<16xf32, #tpu.memory_space<smem>>
    %200 = vector.broadcast %199 : f32 to vector<8x128xf32>
    %201 = arith.subf %5, %200 : vector<8x128xf32>
    %cst_54 = arith.constant 1.000000e+00 : f32
    %202 = vector.broadcast %cst_54 : f32 to vector<8x128xf32>
    %203 = arith.divf %202, %201 : vector<8x128xf32>
    %c10_55 = arith.constant 10 : index
    %204 = memref.load %arg4[%c10_55] : memref<16xf32, #tpu.memory_space<smem>>
    %205 = vector.broadcast %204 : f32 to vector<8x128xf32>
    %206 = arith.mulf %205, %203 : vector<8x128xf32>
    %207 = arith.addf %188, %206 : vector<8x128xf32>
    %c10_56 = arith.constant 10 : index
    %208 = memref.load %arg3[%c10_56] : memref<16xf32, #tpu.memory_space<smem>>
    %209 = vector.broadcast %208 : f32 to vector<8x128xf32>
    %210 = arith.mulf %209, %203 : vector<8x128xf32>
    %211 = arith.addf %192, %210 : vector<8x128xf32>
    %212 = math.absf %201 : vector<8x128xf32>
    %cst_57 = arith.constant 9.99999982E-15 : f32
    %213 = vector.broadcast %cst_57 : f32 to vector<8x128xf32>
    %214 = arith.cmpf olt, %212, %213 : vector<8x128xf32>
    %c10_58 = arith.constant 10 : index
    %215 = memref.load %arg5[%c10_58] : memref<16xf32, #tpu.memory_space<smem>>
    %216 = vector.broadcast %215 : f32 to vector<8x128xf32>
    %217 = arith.select %214, %216, %198 : vector<8x128xi1>, vector<8x128xf32>
    %c11 = arith.constant 11 : index
    %218 = memref.load %arg2[%c11] : memref<16xf32, #tpu.memory_space<smem>>
    %219 = vector.broadcast %218 : f32 to vector<8x128xf32>
    %220 = arith.subf %5, %219 : vector<8x128xf32>
    %cst_59 = arith.constant 1.000000e+00 : f32
    %221 = vector.broadcast %cst_59 : f32 to vector<8x128xf32>
    %222 = arith.divf %221, %220 : vector<8x128xf32>
    %c11_60 = arith.constant 11 : index
    %223 = memref.load %arg4[%c11_60] : memref<16xf32, #tpu.memory_space<smem>>
    %224 = vector.broadcast %223 : f32 to vector<8x128xf32>
    %225 = arith.mulf %224, %222 : vector<8x128xf32>
    %226 = arith.addf %207, %225 : vector<8x128xf32>
    %c11_61 = arith.constant 11 : index
    %227 = memref.load %arg3[%c11_61] : memref<16xf32, #tpu.memory_space<smem>>
    %228 = vector.broadcast %227 : f32 to vector<8x128xf32>
    %229 = arith.mulf %228, %222 : vector<8x128xf32>
    %230 = arith.addf %211, %229 : vector<8x128xf32>
    %231 = math.absf %220 : vector<8x128xf32>
    %cst_62 = arith.constant 9.99999982E-15 : f32
    %232 = vector.broadcast %cst_62 : f32 to vector<8x128xf32>
    %233 = arith.cmpf olt, %231, %232 : vector<8x128xf32>
    %c11_63 = arith.constant 11 : index
    %234 = memref.load %arg5[%c11_63] : memref<16xf32, #tpu.memory_space<smem>>
    %235 = vector.broadcast %234 : f32 to vector<8x128xf32>
    %236 = arith.select %233, %235, %217 : vector<8x128xi1>, vector<8x128xf32>
    %c12 = arith.constant 12 : index
    %237 = memref.load %arg2[%c12] : memref<16xf32, #tpu.memory_space<smem>>
    %238 = vector.broadcast %237 : f32 to vector<8x128xf32>
    %239 = arith.subf %5, %238 : vector<8x128xf32>
    %cst_64 = arith.constant 1.000000e+00 : f32
    %240 = vector.broadcast %cst_64 : f32 to vector<8x128xf32>
    %241 = arith.divf %240, %239 : vector<8x128xf32>
    %c12_65 = arith.constant 12 : index
    %242 = memref.load %arg4[%c12_65] : memref<16xf32, #tpu.memory_space<smem>>
    %243 = vector.broadcast %242 : f32 to vector<8x128xf32>
    %244 = arith.mulf %243, %241 : vector<8x128xf32>
    %245 = arith.addf %226, %244 : vector<8x128xf32>
    %c12_66 = arith.constant 12 : index
    %246 = memref.load %arg3[%c12_66] : memref<16xf32, #tpu.memory_space<smem>>
    %247 = vector.broadcast %246 : f32 to vector<8x128xf32>
    %248 = arith.mulf %247, %241 : vector<8x128xf32>
    %249 = arith.addf %230, %248 : vector<8x128xf32>
    %250 = math.absf %239 : vector<8x128xf32>
    %cst_67 = arith.constant 9.99999982E-15 : f32
    %251 = vector.broadcast %cst_67 : f32 to vector<8x128xf32>
    %252 = arith.cmpf olt, %250, %251 : vector<8x128xf32>
    %c12_68 = arith.constant 12 : index
    %253 = memref.load %arg5[%c12_68] : memref<16xf32, #tpu.memory_space<smem>>
    %254 = vector.broadcast %253 : f32 to vector<8x128xf32>
    %255 = arith.select %252, %254, %236 : vector<8x128xi1>, vector<8x128xf32>
    %c13 = arith.constant 13 : index
    %256 = memref.load %arg2[%c13] : memref<16xf32, #tpu.memory_space<smem>>
    %257 = vector.broadcast %256 : f32 to vector<8x128xf32>
    %258 = arith.subf %5, %257 : vector<8x128xf32>
    %cst_69 = arith.constant 1.000000e+00 : f32
    %259 = vector.broadcast %cst_69 : f32 to vector<8x128xf32>
    %260 = arith.divf %259, %258 : vector<8x128xf32>
    %c13_70 = arith.constant 13 : index
    %261 = memref.load %arg4[%c13_70] : memref<16xf32, #tpu.memory_space<smem>>
    %262 = vector.broadcast %261 : f32 to vector<8x128xf32>
    %263 = arith.mulf %262, %260 : vector<8x128xf32>
    %264 = arith.addf %245, %263 : vector<8x128xf32>
    %c13_71 = arith.constant 13 : index
    %265 = memref.load %arg3[%c13_71] : memref<16xf32, #tpu.memory_space<smem>>
    %266 = vector.broadcast %265 : f32 to vector<8x128xf32>
    %267 = arith.mulf %266, %260 : vector<8x128xf32>
    %268 = arith.addf %249, %267 : vector<8x128xf32>
    %269 = math.absf %258 : vector<8x128xf32>
    %cst_72 = arith.constant 9.99999982E-15 : f32
    %270 = vector.broadcast %cst_72 : f32 to vector<8x128xf32>
    %271 = arith.cmpf olt, %269, %270 : vector<8x128xf32>
    %c13_73 = arith.constant 13 : index
    %272 = memref.load %arg5[%c13_73] : memref<16xf32, #tpu.memory_space<smem>>
    %273 = vector.broadcast %272 : f32 to vector<8x128xf32>
    %274 = arith.select %271, %273, %255 : vector<8x128xi1>, vector<8x128xf32>
    %c14 = arith.constant 14 : index
    %275 = memref.load %arg2[%c14] : memref<16xf32, #tpu.memory_space<smem>>
    %276 = vector.broadcast %275 : f32 to vector<8x128xf32>
    %277 = arith.subf %5, %276 : vector<8x128xf32>
    %cst_74 = arith.constant 1.000000e+00 : f32
    %278 = vector.broadcast %cst_74 : f32 to vector<8x128xf32>
    %279 = arith.divf %278, %277 : vector<8x128xf32>
    %c14_75 = arith.constant 14 : index
    %280 = memref.load %arg4[%c14_75] : memref<16xf32, #tpu.memory_space<smem>>
    %281 = vector.broadcast %280 : f32 to vector<8x128xf32>
    %282 = arith.mulf %281, %279 : vector<8x128xf32>
    %283 = arith.addf %264, %282 : vector<8x128xf32>
    %c14_76 = arith.constant 14 : index
    %284 = memref.load %arg3[%c14_76] : memref<16xf32, #tpu.memory_space<smem>>
    %285 = vector.broadcast %284 : f32 to vector<8x128xf32>
    %286 = arith.mulf %285, %279 : vector<8x128xf32>
    %287 = arith.addf %268, %286 : vector<8x128xf32>
    %288 = math.absf %277 : vector<8x128xf32>
    %cst_77 = arith.constant 9.99999982E-15 : f32
    %289 = vector.broadcast %cst_77 : f32 to vector<8x128xf32>
    %290 = arith.cmpf olt, %288, %289 : vector<8x128xf32>
    %c14_78 = arith.constant 14 : index
    %291 = memref.load %arg5[%c14_78] : memref<16xf32, #tpu.memory_space<smem>>
    %292 = vector.broadcast %291 : f32 to vector<8x128xf32>
    %293 = arith.select %290, %292, %274 : vector<8x128xi1>, vector<8x128xf32>
    %c15 = arith.constant 15 : index
    %294 = memref.load %arg2[%c15] : memref<16xf32, #tpu.memory_space<smem>>
    %295 = vector.broadcast %294 : f32 to vector<8x128xf32>
    %296 = arith.subf %5, %295 : vector<8x128xf32>
    %cst_79 = arith.constant 1.000000e+00 : f32
    %297 = vector.broadcast %cst_79 : f32 to vector<8x128xf32>
    %298 = arith.divf %297, %296 : vector<8x128xf32>
    %c15_80 = arith.constant 15 : index
    %299 = memref.load %arg4[%c15_80] : memref<16xf32, #tpu.memory_space<smem>>
    %300 = vector.broadcast %299 : f32 to vector<8x128xf32>
    %301 = arith.mulf %300, %298 : vector<8x128xf32>
    %302 = arith.addf %283, %301 : vector<8x128xf32>
    %c15_81 = arith.constant 15 : index
    %303 = memref.load %arg3[%c15_81] : memref<16xf32, #tpu.memory_space<smem>>
    %304 = vector.broadcast %303 : f32 to vector<8x128xf32>
    %305 = arith.mulf %304, %298 : vector<8x128xf32>
    %306 = arith.addf %287, %305 : vector<8x128xf32>
    %307 = math.absf %296 : vector<8x128xf32>
    %cst_82 = arith.constant 9.99999982E-15 : f32
    %308 = vector.broadcast %cst_82 : f32 to vector<8x128xf32>
    %309 = arith.cmpf olt, %307, %308 : vector<8x128xf32>
    %c15_83 = arith.constant 15 : index
    %310 = memref.load %arg5[%c15_83] : memref<16xf32, #tpu.memory_space<smem>>
    %311 = vector.broadcast %310 : f32 to vector<8x128xf32>
    %312 = arith.select %309, %311, %293 : vector<8x128xi1>, vector<8x128xf32>
    %313 = arith.divf %302, %306 : vector<8x128xf32>
    %314 = arith.cmpf one, %312, %312 : vector<8x128xf32>
    %315 = arith.select %314, %313, %312 : vector<8x128xi1>, vector<8x128xf32>
    %316 = arith.index_cast %3 : i32 to index
    %c0_84 = arith.constant 0 : index
    %317 = vector.load %arg6[%316, %c0_84] : memref<8x128xf32, #tpu.memory_space<vmem>>, vector<8x128xf32>
    tpu.vector_store %arg6[%316, %c0_84], %315 {strides = array<i32>} : memref<8x128xf32, #tpu.memory_space<vmem>>, vector<8x128xf32>,
    %c1_i32_85 = arith.constant 1 : i32
    return
  }
  func.func @transform_0(%arg0: i32) -> (i32, i32) {
    %c0_i32 = arith.constant 0 : i32
    %c0_i32_0 = arith.constant 0 : i32
    return %arg0, %c0_i32 : i32, i32
  }
  func.func @transform_1(%arg0: i32) -> i32 {
    %c0_i32 = arith.constant 0 : i32
    %c0_i32_0 = arith.constant 0 : i32
    return %c0_i32 : i32
  }
  func.func @transform_2(%arg0: i32) -> i32 {
    %c0_i32 = arith.constant 0 : i32
    %c0_i32_0 = arith.constant 0 : i32
    return %c0_i32 : i32
  }
  func.func @transform_3(%arg0: i32) -> i32 {
    %c0_i32 = arith.constant 0 : i32
    %c0_i32_0 = arith.constant 0 : i32
    return %c0_i32 : i32
  }
  func.func @transform_4(%arg0: i32) -> i32 {
    %c0_i32 = arith.constant 0 : i32
    %c0_i32_0 = arith.constant 0 : i32
    return %c0_i32 : i32
  }
  func.func @transform_5(%arg0: i32) -> (i32, i32) {
    %c0_i32 = arith.constant 0 : i32
    %c0_i32_0 = arith.constant 0 : i32
    return %arg0, %c0_i32 : i32, i32
  }
}

</mosaic_0001>

<llo_original>
// kernel: tpu_custom_call.1
$region0: #{tpu_custom_call.1}
  #allocation0 [shape = 'u32[]', space=smem, size = 0x4, offset = 0x4, fixed_abs, tag = 'smem constant byte address 0x4 - core index']
  #allocation1 [shape = 'u32[144,128]{1,0:T(1,128)}', space=vmem, size = 0x12000, scoped, tag = 'internal scratch']
  %s0 = inlined_call_operand.hbm [shape: f32[8,128], index: 0, kind: input, shape index: {}]
  %s1 = inlined_call_operand.vmem [shape: f32[16], index: 1, kind: input, shape index: {}]
  %s2 = inlined_call_operand.vmem [shape: f32[16], index: 2, kind: input, shape index: {}]
  %s3 = inlined_call_operand.vmem [shape: f32[16], index: 3, kind: input, shape index: {}]
  %s4 = inlined_call_operand.vmem [shape: f32[16], index: 4, kind: input, shape index: {}]
  %s5 = inlined_call_operand.hbm [shape: f32[8,128], index: 5, kind: output, shape index: {}]
  %s6 = sld [smem:[#allocation0]]
  $region50: #{tpu_custom_call.1} parent=0
    _
  %s8 = ssub.s32 1, %s6
  %s9 = scalar_select 0, %s8, %s6
  $region1: #{tpu_custom_call.1} parent=0
    #allocation2 [shape = 'u8[4096]{0}', space=vmem, size = 0x1000, scoped, tag = 'input window, operand 0, single buffered']
    #allocation3 [shape = 's32[1]{0}', space=sflag, size = 0x4, scoped, tag = 'scoped memory for tpu_custom_call.1']
    #allocation4 [shape = 's32[1]{0}', space=sflag, size = 0x4, scoped, tag = 'scoped memory for tpu_custom_call.1']
    #allocation5 [shape = 's32[1]{0}', space=sflag, size = 0x4, scoped, tag = 'scoped memory for tpu_custom_call.1']
    #allocation6 [shape = 'u8[512]{0}', space=smem, size = 0x200, scoped, tag = 'input window, operand 1, single buffered']
    #allocation7 [shape = 'u8[512]{0}', space=smem, size = 0x200, scoped, tag = 'input window, operand 2, single buffered']
    #allocation8 [shape = 's32[1]{0}', space=sflag, size = 0x4, scoped, tag = 'scoped memory for tpu_custom_call.1']
    #allocation9 [shape = 'u8[512]{0}', space=smem, size = 0x200, scoped, tag = 'input window, operand 3, single buffered']
    #allocation10 [shape = 'u8[512]{0}', space=smem, size = 0x200, scoped, tag = 'input window, operand 4, single buffered']
    #allocation11 [shape = 's32[1]{0}', space=sflag, size = 0x4, scoped, tag = 'scoped memory for tpu_custom_call.1']
    #allocation12 [shape = 'u8[4096]{0}', space=vmem, size = 0x1000, scoped, tag = 'output window, operand 0, single buffered']
    %10 = vsyncpa [#allocation3], 0
    %11 = vsyncpa [#allocation5], 0
    %12 = vsyncpa [#allocation8], 0
    %13 = vsyncpa [#allocation11], 0
    %14 = vsyncpa [#allocation4], 0
    // Predicated region
    $region2: #{tpu_custom_call.1} parent=1 // pred_check
      _
    $region3: #{tpu_custom_call.1} parent=1 // pred_check_branch
      %16 = sbr.rel (0) target = $region5
    $region4: #{tpu_custom_call.1} parent=1 // pred_region
      %s18 = ssub.s32 128, 128
      %19 = vsyncadd [#allocation3], %s18
      %s21 = sshll.u32 [#allocation2], 4
      %s22 = int_to_ptr.vmem [resolvable:$true] %s21
      %24 = dma.hbm_to_vmem [thread:$0]  %s0, 128, %s22, [#allocation3]
    $region5: #{tpu_custom_call.1} parent=1 // pred_fallthru
      _
    // Predicated region
    $region6: #{tpu_custom_call.1} parent=1 // pred_check
      _
    $region7: #{tpu_custom_call.1} parent=1 // pred_check_branch
      %26 = sbr.rel (0) target = $region9
    $region8: #{tpu_custom_call.1} parent=1 // pred_region
      %s28 = ssub.s32 16, 16
      %29 = vsyncadd [#allocation5], %s28
      %s31 = sshll.u32 %s1, 4
      %s32 = int_to_ptr.vmem [resolvable:$true] %s31
      %34 = dma.vmem_to_smem %s32, 16, [#allocation6], [#allocation5]
    $region9: #{tpu_custom_call.1} parent=1 // pred_fallthru
      _
    // Predicated region
    $region10: #{tpu_custom_call.1} parent=1 // pred_check
      _
    $region11: #{tpu_custom_call.1} parent=1 // pred_check_branch
      %36 = sbr.rel (0) target = $region13
    $region12: #{tpu_custom_call.1} parent=1 // pred_region
      %s38 = ssub.s32 16, 16
      %39 = vsyncadd [#allocation8], %s38
      %s41 = sshll.u32 %s2, 4
      %s42 = int_to_ptr.vmem [resolvable:$true] %s41
      %44 = dma.vmem_to_smem %s42, 16, [#allocation7], [#allocation8]
    $region13: #{tpu_custom_call.1} parent=1 // pred_fallthru
      _
    // Predicated region
    $region14: #{tpu_custom_call.1} parent=1 // pred_check
      _
    $region15: #{tpu_custom_call.1} parent=1 // pred_check_branch
      %46 = sbr.rel (0) target = $region17
    $region16: #{tpu_custom_call.1} parent=1 // pred_region
      %s48 = ssub.s32 16, 16
      %49 = vsyncadd [#allocation8], %s48
      %s51 = sshll.u32 %s3, 4
      %s52 = int_to_ptr.vmem [resolvable:$true] %s51
      %54 = dma.vmem_to_smem %s52, 16, [#allocation9], [#allocation8]
    $region17: #{tpu_custom_call.1} parent=1 // pred_fallthru
      _
    // Predicated region
    $region18: #{tpu_custom_call.1} parent=1 // pred_check
      _
    $region19: #{tpu_custom_call.1} parent=1 // pred_check_branch
      %56 = sbr.rel (0) target = $region21
    $region20: #{tpu_custom_call.1} parent=1 // pred_region
      %s58 = ssub.s32 16, 16
      %59 = vsyncadd [#allocation11], %s58
      %s61 = sshll.u32 %s4, 4
      %s62 = int_to_ptr.vmem [resolvable:$true] %s61
      %64 = dma.vmem_to_smem %s62, 16, [#allocation10], [#allocation11]
    $region21: #{tpu_custom_call.1} parent=1 // pred_fallthru
      _
    // Predicated region
    $region22: #{tpu_custom_call.1} parent=1 // pred_check
      _
    $region23: #{tpu_custom_call.1} parent=1 // pred_check_branch
      %66 = sbr.rel (0) target = $region25
    $region24: #{tpu_custom_call.1} parent=1 // pred_region
      %67 = dma.done [#allocation3], 128
    $region25: #{tpu_custom_call.1} parent=1 // pred_fallthru
      _
    // Predicated region
    $region26: #{tpu_custom_call.1} parent=1 // pred_check
      _
    $region27: #{tpu_custom_call.1} parent=1 // pred_check_branch
      %69 = sbr.rel (0) target = $region29
    $region28: #{tpu_custom_call.1} parent=1 // pred_region
      %70 = dma.done [#allocation5], 16
    $region29: #{tpu_custom_call.1} parent=1 // pred_fallthru
      _
    // Predicated region
    $region30: #{tpu_custom_call.1} parent=1 // pred_check
      _
    $region31: #{tpu_custom_call.1} parent=1 // pred_check_branch
      %72 = sbr.rel (0) target = $region33
    $region32: #{tpu_custom_call.1} parent=1 // pred_region
      %73 = dma.done [#allocation8], 16
    $region33: #{tpu_custom_call.1} parent=1 // pred_fallthru
      _
    // Predicated region
    $region34: #{tpu_custom_call.1} parent=1 // pred_check
      _
    $region35: #{tpu_custom_call.1} parent=1 // pred_check_branch
      %75 = sbr.rel (0) target = $region37
    $region36: #{tpu_custom_call.1} parent=1 // pred_region
      %76 = dma.done [#allocation8], 16
    $region37: #{tpu_custom_call.1} parent=1 // pred_fallthru
      _
    // Predicated region
    $region38: #{tpu_custom_call.1} parent=1 // pred_check
      _
    $region39: #{tpu_custom_call.1} parent=1 // pred_check_branch
      %78 = sbr.rel (0) target = $region41
    $region40: #{tpu_custom_call.1} parent=1 // pred_region
      %79 = dma.done [#allocation11], 16
    $region41: #{tpu_custom_call.1} parent=1 // pred_fallthru
      _
    %80 = sfence
    %v81 = vld [vmem:[#allocation2] sm:$0xff]
    %s82 = sld [smem:[#allocation6]]
    %v83 = vstv %s82
    %v84 = vsub.f32 %v81, %v83
    %v85 = vrcp.pop %v84
    %v86 = vmul.f32 1.0, %v85
    %s87 = sld [smem:[#allocation9]]
    %v88 = vstv %s87
    %v89 = vmul.f32 %v88, %v86
    %v90 = vadd.f32 %v89, 0.0
    %s91 = sld [smem:[#allocation7]]
    %v92 = vstv %s91
    %v93 = vmul.f32 %v92, %v86
    %v94 = vadd.f32 %v93, 0.0
    %v95 = vand.u32 2147483647, %v84
    %vm96 = vcmp.lt.f32.partialorder %v95, 1e-14
    %s97 = sld [smem:[#allocation10]]
    %v98 = vstv %s97
    %v99 = vsel %vm96, %v98, nan
    %s100 = sld [smem:[#allocation6 + $0x1]]
    %v101 = vstv %s100
    %v102 = vsub.f32 %v81, %v101
    %v103 = vrcp.pop %v102
    %v104 = vmul.f32 1.0, %v103
    %s105 = sld [smem:[#allocation9 + $0x1]]
    %v106 = vstv %s105
    %v107 = vmul.f32 %v106, %v104
    %v108 = vadd.f32 %v90, %v107
    %s109 = sld [smem:[#allocation7 + $0x1]]
    %v110 = vstv %s109
    %v111 = vmul.f32 %v110, %v104
    %v112 = vadd.f32 %v94, %v111
    %v113 = vand.u32 2147483647, %v102
    %vm114 = vcmp.lt.f32.partialorder %v113, 1e-14
    %s115 = sld [smem:[#allocation10 + $0x1]]
    %v116 = vstv %s115
    %v117 = vsel %vm114, %v116, %v99
    %s118 = sld [smem:[#allocation6 + $0x2]]
    %v119 = vstv %s118
    %v120 = vsub.f32 %v81, %v119
    %v121 = vrcp.pop %v120
    %v122 = vmul.f32 1.0, %v121
    %s123 = sld [smem:[#allocation9 + $0x2]]
    %v124 = vstv %s123
    %v125 = vmul.f32 %v124, %v122
    %v126 = vadd.f32 %v108, %v125
    %s127 = sld [smem:[#allocation7 + $0x2]]
    %v128 = vstv %s127
    %v129 = vmul.f32 %v128, %v122
    %v130 = vadd.f32 %v112, %v129
    %v131 = vand.u32 2147483647, %v120
    %vm132 = vcmp.lt.f32.partialorder %v131, 1e-14
    %s133 = sld [smem:[#allocation10 + $0x2]]
    %v134 = vstv %s133
    %v135 = vsel %vm132, %v134, %v117
    %s136 = sld [smem:[#allocation6 + $0x3]]
    %v137 = vstv %s136
    %v138 = vsub.f32 %v81, %v137
    %v139 = vrcp.pop %v138
    %v140 = vmul.f32 1.0, %v139
    %s141 = sld [smem:[#allocation9 + $0x3]]
    %v142 = vstv %s141
    %v143 = vmul.f32 %v142, %v140
    %v144 = vadd.f32 %v126, %v143
    %s145 = sld [smem:[#allocation7 + $0x3]]
    %v146 = vstv %s145
    %v147 = vmul.f32 %v146, %v140
    %v148 = vadd.f32 %v130, %v147
    %v149 = vand.u32 2147483647, %v138
    %vm150 = vcmp.lt.f32.partialorder %v149, 1e-14
    %s151 = sld [smem:[#allocation10 + $0x3]]
    %v152 = vstv %s151
    %v153 = vsel %vm150, %v152, %v135
    %s154 = sld [smem:[#allocation6 + $0x4]]
    %v155 = vstv %s154
    %v156 = vsub.f32 %v81, %v155
    %v157 = vrcp.pop %v156
    %v158 = vmul.f32 1.0, %v157
    %s159 = sld [smem:[#allocation9 + $0x4]]
    %v160 = vstv %s159
    %v161 = vmul.f32 %v160, %v158
    %v162 = vadd.f32 %v144, %v161
    %s163 = sld [smem:[#allocation7 + $0x4]]
    %v164 = vstv %s163
    %v165 = vmul.f32 %v164, %v158
    %v166 = vadd.f32 %v148, %v165
    %v167 = vand.u32 2147483647, %v156
    %vm168 = vcmp.lt.f32.partialorder %v167, 1e-14
    %s169 = sld [smem:[#allocation10 + $0x4]]
    %v170 = vstv %s169
    %v171 = vsel %vm168, %v170, %v153
    %s172 = sld [smem:[#allocation6 + $0x5]]
    %v173 = vstv %s172
    %v174 = vsub.f32 %v81, %v173
    %v175 = vrcp.pop %v174
    %v176 = vmul.f32 1.0, %v175
    %s177 = sld [smem:[#allocation9 + $0x5]]
    %v178 = vstv %s177
    %v179 = vmul.f32 %v178, %v176
    %v180 = vadd.f32 %v162, %v179
    %s181 = sld [smem:[#allocation7 + $0x5]]
    %v182 = vstv %s181
    %v183 = vmul.f32 %v182, %v176
    %v184 = vadd.f32 %v166, %v183
    %v185 = vand.u32 2147483647, %v174
    %vm186 = vcmp.lt.f32.partialorder %v185, 1e-14
    %s187 = sld [smem:[#allocation10 + $0x5]]
    %v188 = vstv %s187
    %v189 = vsel %vm186, %v188, %v171
    %s190 = sld [smem:[#allocation6 + $0x6]]
    %v191 = vstv %s190
    %v192 = vsub.f32 %v81, %v191
    %v193 = vrcp.pop %v192
    %v194 = vmul.f32 1.0, %v193
    %s195 = sld [smem:[#allocation9 + $0x6]]
    %v196 = vstv %s195
    %v197 = vmul.f32 %v196, %v194
    %v198 = vadd.f32 %v180, %v197
    %s199 = sld [smem:[#allocation7 + $0x6]]
    %v200 = vstv %s199
    %v201 = vmul.f32 %v200, %v194
    %v202 = vadd.f32 %v184, %v201
    %v203 = vand.u32 2147483647, %v192
    %vm204 = vcmp.lt.f32.partialorder %v203, 1e-14
    %s205 = sld [smem:[#allocation10 + $0x6]]
    %v206 = vstv %s205
    %v207 = vsel %vm204, %v206, %v189
    %s208 = sld [smem:[#allocation6 + $0x7]]
    %v209 = vstv %s208
    %v210 = vsub.f32 %v81, %v209
    %v211 = vrcp.pop %v210
    %v212 = vmul.f32 1.0, %v211
    %s213 = sld [smem:[#allocation9 + $0x7]]
    %v214 = vstv %s213
    %v215 = vmul.f32 %v214, %v212
    %v216 = vadd.f32 %v198, %v215
    %s217 = sld [smem:[#allocation7 + $0x7]]
    %v218 = vstv %s217
    %v219 = vmul.f32 %v218, %v212
    %v220 = vadd.f32 %v202, %v219
    %v221 = vand.u32 2147483647, %v210
    %vm222 = vcmp.lt.f32.partialorder %v221, 1e-14
    %s223 = sld [smem:[#allocation10 + $0x7]]
    %v224 = vstv %s223
    %v225 = vsel %vm222, %v224, %v207
    %s226 = sld [smem:[#allocation6 + $0x8]]
    %v227 = vstv %s226
    %v228 = vsub.f32 %v81, %v227
    %v229 = vrcp.pop %v228
    %v230 = vmul.f32 1.0, %v229
    %s231 = sld [smem:[#allocation9 + $0x8]]
    %v232 = vstv %s231
    %v233 = vmul.f32 %v232, %v230
    %v234 = vadd.f32 %v216, %v233
    %s235 = sld [smem:[#allocation7 + $0x8]]
    %v236 = vstv %s235
    %v237 = vmul.f32 %v236, %v230
    %v238 = vadd.f32 %v220, %v237
    %v239 = vand.u32 2147483647, %v228
    %vm240 = vcmp.lt.f32.partialorder %v239, 1e-14
    %s241 = sld [smem:[#allocation10 + $0x8]]
    %v242 = vstv %s241
    %v243 = vsel %vm240, %v242, %v225
    %s244 = sld [smem:[#allocation6 + $0x9]]
    %v245 = vstv %s244
    %v246 = vsub.f32 %v81, %v245
    %v247 = vrcp.pop %v246
    %v248 = vmul.f32 1.0, %v247
    %s249 = sld [smem:[#allocation9 + $0x9]]
    %v250 = vstv %s249
    %v251 = vmul.f32 %v250, %v248
    %v252 = vadd.f32 %v234, %v251
    %s253 = sld [smem:[#allocation7 + $0x9]]
    %v254 = vstv %s253
    %v255 = vmul.f32 %v254, %v248
    %v256 = vadd.f32 %v238, %v255
    %v257 = vand.u32 2147483647, %v246
    %vm258 = vcmp.lt.f32.partialorder %v257, 1e-14
    %s259 = sld [smem:[#allocation10 + $0x9]]
    %v260 = vstv %s259
    %v261 = vsel %vm258, %v260, %v243
    %s262 = sld [smem:[#allocation6 + $0xa]]
    %v263 = vstv %s262
    %v264 = vsub.f32 %v81, %v263
    %v265 = vrcp.pop %v264
    %v266 = vmul.f32 1.0, %v265
    %s267 = sld [smem:[#allocation9 + $0xa]]
    %v268 = vstv %s267
    %v269 = vmul.f32 %v268, %v266
    %v270 = vadd.f32 %v252, %v269
    %s271 = sld [smem:[#allocation7 + $0xa]]
    %v272 = vstv %s271
    %v273 = vmul.f32 %v272, %v266
    %v274 = vadd.f32 %v256, %v273
    %v275 = vand.u32 2147483647, %v264
    %vm276 = vcmp.lt.f32.partialorder %v275, 1e-14
    %s277 = sld [smem:[#allocation10 + $0xa]]
    %v278 = vstv %s277
    %v279 = vsel %vm276, %v278, %v261
    %s280 = sld [smem:[#allocation6 + $0xb]]
    %v281 = vstv %s280
    %v282 = vsub.f32 %v81, %v281
    %v283 = vrcp.pop %v282
    %v284 = vmul.f32 1.0, %v283
    %s285 = sld [smem:[#allocation9 + $0xb]]
    %v286 = vstv %s285
    %v287 = vmul.f32 %v286, %v284
    %v288 = vadd.f32 %v270, %v287
    %s289 = sld [smem:[#allocation7 + $0xb]]
    %v290 = vstv %s289
    %v291 = vmul.f32 %v290, %v284
    %v292 = vadd.f32 %v274, %v291
    %v293 = vand.u32 2147483647, %v282
    %vm294 = vcmp.lt.f32.partialorder %v293, 1e-14
    %s295 = sld [smem:[#allocation10 + $0xb]]
    %v296 = vstv %s295
    %v297 = vsel %vm294, %v296, %v279
    %s298 = sld [smem:[#allocation6 + $0xc]]
    %v299 = vstv %s298
    %v300 = vsub.f32 %v81, %v299
    %v301 = vrcp.pop %v300
    %v302 = vmul.f32 1.0, %v301
    %s303 = sld [smem:[#allocation9 + $0xc]]
    %v304 = vstv %s303
    %v305 = vmul.f32 %v304, %v302
    %v306 = vadd.f32 %v288, %v305
    %s307 = sld [smem:[#allocation7 + $0xc]]
    %v308 = vstv %s307
    %v309 = vmul.f32 %v308, %v302
    %v310 = vadd.f32 %v292, %v309
    %v311 = vand.u32 2147483647, %v300
    %vm312 = vcmp.lt.f32.partialorder %v311, 1e-14
    %s313 = sld [smem:[#allocation10 + $0xc]]
    %v314 = vstv %s313
    %v315 = vsel %vm312, %v314, %v297
    %s316 = sld [smem:[#allocation6 + $0xd]]
    %v317 = vstv %s316
    %v318 = vsub.f32 %v81, %v317
    %v319 = vrcp.pop %v318
    %v320 = vmul.f32 1.0, %v319
    %s321 = sld [smem:[#allocation9 + $0xd]]
    %v322 = vstv %s321
    %v323 = vmul.f32 %v322, %v320
    %v324 = vadd.f32 %v306, %v323
    %s325 = sld [smem:[#allocation7 + $0xd]]
    %v326 = vstv %s325
    %v327 = vmul.f32 %v326, %v320
    %v328 = vadd.f32 %v310, %v327
    %v329 = vand.u32 2147483647, %v318
    %vm330 = vcmp.lt.f32.partialorder %v329, 1e-14
    %s331 = sld [smem:[#allocation10 + $0xd]]
    %v332 = vstv %s331
    %v333 = vsel %vm330, %v332, %v315
    %s334 = sld [smem:[#allocation6 + $0xe]]
    %v335 = vstv %s334
    %v336 = vsub.f32 %v81, %v335
    %v337 = vrcp.pop %v336
    %v338 = vmul.f32 1.0, %v337
    %s339 = sld [smem:[#allocation9 + $0xe]]
    %v340 = vstv %s339
    %v341 = vmul.f32 %v340, %v338
    %v342 = vadd.f32 %v324, %v341
    %s343 = sld [smem:[#allocation7 + $0xe]]
    %v344 = vstv %s343
    %v345 = vmul.f32 %v344, %v338
    %v346 = vadd.f32 %v328, %v345
    %v347 = vand.u32 2147483647, %v336
    %vm348 = vcmp.lt.f32.partialorder %v347, 1e-14
    %s349 = sld [smem:[#allocation10 + $0xe]]
    %v350 = vstv %s349
    %v351 = vsel %vm348, %v350, %v333
    %s352 = sld [smem:[#allocation6 + $0xf]]
    %v353 = vstv %s352
    %v354 = vsub.f32 %v81, %v353
    %v355 = vrcp.pop %v354
    %v356 = vmul.f32 1.0, %v355
    %s357 = sld [smem:[#allocation9 + $0xf]]
    %v358 = vstv %s357
    %v359 = vmul.f32 %v358, %v356
    %v360 = vadd.f32 %v342, %v359
    %s361 = sld [smem:[#allocation7 + $0xf]]
    %v362 = vstv %s361
    %v363 = vmul.f32 %v362, %v356
    %v364 = vadd.f32 %v346, %v363
    %v365 = vand.u32 2147483647, %v354
    %vm366 = vcmp.lt.f32.partialorder %v365, 1e-14
    %s367 = sld [smem:[#allocation10 + $0xf]]
    %v368 = vstv %s367
    %v369 = vsel %vm366, %v368, %v351
    %v370 = vrcp.pop %v364
    %v371 = vmul.f32 %v360, %v370
    %vm372 = vcmp.ne.f32.partialorder %v369, %v369
    %v373 = vsel %vm372, %v371, %v369
    %374 = vst [vmem:[#allocation12] sm:$0xff] %v373
    // Predicated region
    $region42: #{tpu_custom_call.1} parent=1 // pred_check
      _
    $region43: #{tpu_custom_call.1} parent=1 // pred_check_branch
      %376 = sbr.rel (0) target = $region45
    $region44: #{tpu_custom_call.1} parent=1 // pred_region
      %s378 = ssub.s32 128, 128
      %379 = vsyncadd [#allocation4], %s378
      %s381 = sshll.u32 [#allocation12], 4
      %s382 = int_to_ptr.vmem [resolvable:$true] %s381
      %384 = dma.vmem_to_hbm [thread:$0]  %s382, 128, %s5, [#allocation4]
    $region45: #{tpu_custom_call.1} parent=1 // pred_fallthru
      _
    // Predicated region
    $region46: #{tpu_custom_call.1} parent=1 // pred_check
      _
    $region47: #{tpu_custom_call.1} parent=1 // pred_check_branch
      %386 = sbr.rel (0) target = $region49
    $region48: #{tpu_custom_call.1} parent=1 // pred_region
      %387 = dma.done [#allocation4], 128
    $region49: #{tpu_custom_call.1} parent=1 // pred_fallthru
      _
    %388 = vsyncpa [#allocation3], 1
    %389 = vsyncpa [#allocation4], 1
    %390 = vsyncpa [#allocation5], 1
    %391 = vsyncpa [#allocation8], 1
    %392 = vsyncpa [#allocation11], 1

</llo_original>
